<compile_context>
chip_gen: v7x
topology: tpu7x:2x2x1
jax: 0.10.0
libtpu: 0.0.40
codegen_flags: <defaults>
</compile_context>

<pallas_src>
import jax
import jax.numpy as jnp
from jax.experimental import pallas as pl
from jax.experimental.pallas import tpu as pltpu


def _pos_embed_kernel(x_ref, pos_ref, o_ref):
    # x_ref/o_ref views: (TB, TF); pos_ref view: (1, TF).
    # Sublane-broadcast add on the VPU; kernel is purely HBM-bandwidth bound.
    o_ref[...] = x_ref[...] + pos_ref[...]


def _vmem_cap_bytes():
    """0.75 * physical per-core VMEM when queryable, else a conservative 48 MiB
    (safe on v7x's 64 MiB per-TC VMEM; plenty of headroom on v5e/v6e)."""
    try:
        cap = getattr(pltpu.get_tpu_info(), "vmem_capacity_bytes", None)
        if cap:
            return int(0.75 * cap)
    except Exception:
        pass
    return 48 << 20


def _choose_tiles(B, F, itemsize, vmem_cap, target_bytes=6 << 20,
                  headroom=4 << 20):
    """Pick (batch_tile, flat_tile, vmem_estimate).

    TB fully packs sublanes for the dtype (8 f32 / 16 bf16 / 32 int8 rows per
    vreg); TF targets ~target_bytes per x/out block, lane-dense (multiple of
    128 or the full dim), and shrinks if the double-buffered pipeline (x-in,
    out, 8-sublane-padded pos) would not fit under vmem_cap."""
    pack = max(8, (8 * 4) // max(1, itemsize))   # rows per fully-packed vreg
    TB = B if B <= pack else pack                # full dim or multiple of 8

    tf_budget = max(128, ((target_bytes // (TB * itemsize)) // 128) * 128)
    TF = F if F <= tf_budget else tf_budget      # full dim or multiple of 128

    def est(tf):
        tile = TB * tf * itemsize                # one x (or out) block
        pos_pad = 8 * tf * itemsize              # (1, TF) pads to 8 sublanes
        # x-in, out, pos: each double-buffered by the default pipeline.
        return 2 * (2 * tile + pos_pad) + headroom

    while est(TF) > vmem_cap and TF > 1024:
        TF = max(128, ((TF // 2) // 128) * 128)
    return TB, TF, est(TF)


def positional_embedding_1d(x, pos_embedding, *, donate_x=False):
    """x: (B, S, D), pos_embedding: (1, S, D) -> (B, S, D) == x + pos_embedding."""
    B, S, D = x.shape
    assert pos_embedding.shape == (1, S, D)
    pos_embedding = pos_embedding.astype(x.dtype)

    # Flatten (S, D) -> F for a lane-dense layout; the broadcast over the batch
    # axis is preserved by the flattened view (free reshape, row-major).
    F = S * D
    x2 = x.reshape(B, F)
    pos2 = pos_embedding.reshape(1, F)

    itemsize = jnp.dtype(x.dtype).itemsize
    vmem_cap = _vmem_cap_bytes()
    TB, TF, vmem_est = _choose_tiles(B, F, itemsize, vmem_cap)
    nb = pl.cdiv(B, TB)
    nf = pl.cdiv(F, TF)

    vmem_bytes = int(min(max(vmem_est, 16 << 20), vmem_cap))

    if nf == 1 and nb > 1:
        # Megacore guard (v7x): the flat axis has only one block, so lead with
        # the batch axis to keep both TensorCores busy. pos-DMA elision is moot
        # here since the pos block index is constant anyway.
        grid = (nb, nf)
        x_map = lambda b, f: (b, f)
        pos_map = lambda b, f: (0, f)
    else:
        # Batch innermost: pos block index is constant across consecutive grid
        # steps, so its repeated DMA is elided.
        grid = (nf, nb)
        x_map = lambda f, b: (b, f)
        pos_map = lambda f, b: (0, f)

    out2 = pl.pallas_call(
        _pos_embed_kernel,
        out_shape=jax.ShapeDtypeStruct((B, F), x.dtype),
        grid_spec=pltpu.PrefetchScalarGridSpec(
            num_scalar_prefetch=0,
            grid=grid,
            in_specs=[
                pl.BlockSpec((TB, TF), x_map),    # x
                pl.BlockSpec((1, TF), pos_map),   # pos (broadcast over batch)
            ],
            out_specs=pl.BlockSpec((TB, TF), x_map),
        ),
        compiler_params=pltpu.CompilerParams(
            # Both axes independent -> shards across the 2 TensorCores on v7x;
            # neutral on v5e/v6e (single TC).
            dimension_semantics=("parallel", "parallel"),
            vmem_limit_bytes=vmem_bytes,
        ),
        cost_estimate=pl.CostEstimate(
            flops=B * F,
            bytes_accessed=(2 * B * F + F) * itemsize,
            transcendentals=0,
        ),
        # In-place add on x's buffer when the caller donates x (dead after op).
        input_output_aliases=({0: 0} if donate_x else {}),
    )(x2, pos2)

    return out2.reshape(B, S, D)


if __name__ == "__main__":
    B, S, D = 2, 8, 32
    key = jax.random.PRNGKey(0)
    kx, kp = jax.random.split(key)

    x = jax.random.normal(kx, (B, S, D), dtype=jnp.float32)
    # nn.Parameter(torch.zeros(1, seq_len, dim)) initializes to zeros; use a
    # deterministic non-zero init here so the add is actually exercised.
    pos_embedding = jax.random.normal(kp, (1, S, D), dtype=jnp.float32) * 0.02

    out = positional_embedding_1d(x, pos_embedding)
    out = jax.block_until_ready(out)

    ref = x + pos_embedding
    assert out.shape == (B, S, D)
    assert jnp.allclose(out, ref, atol=1e-6, rtol=1e-6)

    print("KERNEL_OK")
</pallas_src>

<mosaic_0001>
module attributes {stable_mosaic.version = 11 : i64} {
  func.func @_pos_embed_kernel(%arg0: i32, %arg1: i32, %arg2: memref<2x256xf32, #tpu.memory_space<vmem>>, %arg3: memref<1x256xf32, #tpu.memory_space<vmem>>, %arg4: memref<2x256xf32, #tpu.memory_space<vmem>>) attributes {dimension_semantics = [#tpu.dimension_semantics<parallel>, #tpu.dimension_semantics<parallel>], iteration_bounds = array<i64: 1, 1>, scalar_prefetch = 0 : i64, scratch_operands = 0 : i64, tpu.core_type = #tpu.core_type<tc>, window_params = [{transform_indices = @transform_0, window_bounds = array<i64: 2, 256>}, {transform_indices = @transform_1, window_bounds = array<i64: 1, 256>}, {transform_indices = @transform_2, window_bounds = array<i64: 2, 256>}]} {
    %c0 = arith.constant 0 : index
    %c0_0 = arith.constant 0 : index
    %0 = vector.load %arg2[%c0, %c0_0] : memref<2x256xf32, #tpu.memory_space<vmem>>, vector<2x256xf32>
    %c0_1 = arith.constant 0 : index
    %c0_2 = arith.constant 0 : index
    %1 = vector.load %arg3[%c0_1, %c0_2] : memref<1x256xf32, #tpu.memory_space<vmem>>, vector<1x256xf32>
    %2 = vector.broadcast %1 : vector<1x256xf32> to vector<2x256xf32>
    %3 = arith.addf %0, %2 : vector<2x256xf32>
    %c0_3 = arith.constant 0 : index
    %c0_4 = arith.constant 0 : index
    %4 = vector.load %arg4[%c0_3, %c0_4] : memref<2x256xf32, #tpu.memory_space<vmem>>, vector<2x256xf32>
    tpu.vector_store %arg4[%c0_3, %c0_4], %3 {strides = array<i32>} : memref<2x256xf32, #tpu.memory_space<vmem>>, vector<2x256xf32>,
    return
  }
  func.func @transform_0(%arg0: i32, %arg1: i32) -> (i32, i32) {
    %c0_i32 = arith.constant 0 : i32
    return %arg1, %arg0 : i32, i32
  }
  func.func @transform_1(%arg0: i32, %arg1: i32) -> (i32, i32) {
    %c0_i32 = arith.constant 0 : i32
    %c0_i32_0 = arith.constant 0 : i32
    return %c0_i32, %arg0 : i32, i32
  }
  func.func @transform_2(%arg0: i32, %arg1: i32) -> (i32, i32) {
    %c0_i32 = arith.constant 0 : i32
    return %arg1, %arg0 : i32, i32
  }
}

</mosaic_0001>

<llo_original>
// kernel: tpu_custom_call.1
$region0: #{tpu_custom_call.1}
  #allocation0 [shape = 'u32[]', space=smem, size = 0x4, offset = 0x4, fixed_abs, tag = 'smem constant byte address 0x4 - core index']
  #allocation1 [shape = 'u32[144,128]{1,0:T(1,128)}', space=vmem, size = 0x12000, scoped, tag = 'internal scratch']
  %s0 = inlined_call_operand.hbm [shape: f32[2,256], index: 0, kind: input, shape index: {}]
  %s1 = inlined_call_operand.vmem [shape: f32[1,256], index: 1, kind: input, shape index: {}]
  %s2 = inlined_call_operand.hbm [shape: f32[2,256], index: 2, kind: output, shape index: {}]
  %s3 = sld [smem:[#allocation0]]
  $region22: #{tpu_custom_call.1} parent=0
    _
  %s5 = ssub.s32 1, %s3
  %s6 = scalar_select 0, %s5, %s3
  $region1: #{tpu_custom_call.1} parent=0
    #allocation2 [shape = 'u8[2048]{0}', space=vmem, size = 0x800, scoped, tag = 'input window, operand 0, single buffered']
    #allocation3 [shape = 's32[1]{0}', space=sflag, size = 0x4, scoped, tag = 'scoped memory for tpu_custom_call.1']
    #allocation4 [shape = 's32[1]{0}', space=sflag, size = 0x4, scoped, tag = 'scoped memory for tpu_custom_call.1']
    #allocation5 [shape = 'u8[2048]{0}', space=vmem, size = 0x800, scoped, tag = 'output window, operand 0, single buffered']
    %7 = vsyncpa [#allocation3], 0
    %8 = vsyncpa [#allocation4], 0
    // Predicated region
    $region2: #{tpu_custom_call.1} parent=1 // pred_check
      _
    $region3: #{tpu_custom_call.1} parent=1 // pred_check_branch
      %10 = sbr.rel (0) target = $region5
    $region4: #{tpu_custom_call.1} parent=1 // pred_region
      %s12 = ssub.s32 64, 64
      %13 = vsyncadd [#allocation3], %s12
      %s15 = sshll.u32 [#allocation2], 4
      %s16 = int_to_ptr.vmem [resolvable:$true] %s15
      %18 = dma.hbm_to_vmem [thread:$0]  %s0, 64, %s16, [#allocation3]
    $region5: #{tpu_custom_call.1} parent=1 // pred_fallthru
      _
    // Predicated region
    $region6: #{tpu_custom_call.1} parent=1 // pred_check
      _
    $region7: #{tpu_custom_call.1} parent=1 // pred_check_branch
      %20 = sbr.rel (0) target = $region9
    $region8: #{tpu_custom_call.1} parent=1 // pred_region
      _
    $region9: #{tpu_custom_call.1} parent=1 // pred_fallthru
      _
    // Predicated region
    $region10: #{tpu_custom_call.1} parent=1 // pred_check
      _
    $region11: #{tpu_custom_call.1} parent=1 // pred_check_branch
      %22 = sbr.rel (0) target = $region13
    $region12: #{tpu_custom_call.1} parent=1 // pred_region
      %23 = dma.done [#allocation3], 64
    $region13: #{tpu_custom_call.1} parent=1 // pred_fallthru
      _
    %v24 = vld [vmem:[#allocation2] sm:$0xf]
    %v25 = vld [vmem:[%s1] sm:$0x3]
    %v27 = vlaneseq
    %v28 = vshrl.u32 %v27, 7
    %v29 = vsub.s32 0, %v28
    %v30 = vrot.slane %v25, %v29
    %v31 = vlaneseq
    %v32 = vshrl.u32 %v31, 7
    %v33 = vsub.s32 1, %v32
    %v34 = vrot.slane %v25, %v33
    %v35 = vcombine.low %v30, %v34
    %v37 = vunpack.c.l.s4 1983009808
    %v38 = vunpack.c.0.s8 %v37
    %v39 = vlaneseq
    %v40 = vshrl.u32 %v39, 7
    %v41 = vsub.s32 %v38, %v40
    %v42 = vrot.slane %v35, %v41
    %v44 = vadd.f32 %v24, %v42
    %45 = vst [vmem:[#allocation5] sm:$0xf] %v44
    // Predicated region
    $region14: #{tpu_custom_call.1} parent=1 // pred_check
      _
    $region15: #{tpu_custom_call.1} parent=1 // pred_check_branch
      %47 = sbr.rel (0) target = $region17
    $region16: #{tpu_custom_call.1} parent=1 // pred_region
      %s49 = ssub.s32 64, 64
      %50 = vsyncadd [#allocation4], %s49
      %s52 = sshll.u32 [#allocation5], 4
      %s53 = int_to_ptr.vmem [resolvable:$true] %s52
      %55 = dma.vmem_to_hbm [thread:$0]  %s53, 64, %s2, [#allocation4]
    $region17: #{tpu_custom_call.1} parent=1 // pred_fallthru
      _
    // Predicated region
    $region18: #{tpu_custom_call.1} parent=1 // pred_check
      _
    $region19: #{tpu_custom_call.1} parent=1 // pred_check_branch
      %57 = sbr.rel (0) target = $region21
    $region20: #{tpu_custom_call.1} parent=1 // pred_region
      %58 = dma.done [#allocation4], 64
    $region21: #{tpu_custom_call.1} parent=1 // pred_fallthru
      _
    %59 = vsyncpa [#allocation3], 1
    %60 = vsyncpa [#allocation4], 1

</llo_original>
